<compile_context>
chip_gen: v7x
topology: tpu7x:2x2x1
jax: 0.10.0
libtpu: 0.0.40
codegen_flags: <defaults>
</compile_context>

<pallas_src>
from functools import partial

import jax
import jax.numpy as jnp
from jax.experimental import pallas as pl
from jax.experimental.pallas import tpu as pltpu


def _round_up(x, m):
    return (x + m - 1) // m * m


def classifier_kernel(patches_ref, w_emb_ref, b_emb_ref, w_head_ref, b_head_ref,
                      out_ref, *, batch_tile, num_patches, inv_np):
    """One grid step processes `batch_tile` images.

    patches_ref: (TB*Np, Pd)       operand dtype (f32 or bf16, cast in wrapper)
    w_emb_ref:   (Pd, D_pad)       operand dtype (converted once at init)
    b_emb_ref:   (1, D_pad)        f32
    w_head_ref:  (D_pad, NC_pad)   operand dtype
    b_head_ref:  (1, NC_pad)       f32
    out_ref:     (TB, 1, NC_pad)   f32 lane-dense logits slab
    """
    # image_encoder: patch-embed "conv" as one MXU matmul, f32 accumulate.
    feats = jnp.dot(patches_ref[...], w_emb_ref[...],
                    preferred_element_type=jnp.float32)           # (TB*Np, D_pad)
    feats = jnp.maximum(feats + b_emb_ref[...], 0.0)               # f32 VPU (v5e-safe)

    # Global mean pool: per-image reduction over Np patch rows (XLU/VPU).
    # 1/Np is applied in f32 afterwards, so it is exact even on the bf16 path.
    if batch_tile == 1:
        pooled = jnp.sum(feats, axis=0, keepdims=True)             # (1, D_pad)
    else:
        pooled = jnp.sum(
            feats.reshape(batch_tile, num_patches, feats.shape[-1]), axis=1)
    pooled = pooled * inv_np                                       # (TB, D_pad) f32

    # classification_head: one small (TB, D_pad) @ (D_pad, NC_pad) matmul.
    # (Casting the tiny in-kernel `pooled` is cheap; HBM-fed operands were not
    #  cast in-kernel.)
    logits = jnp.dot(pooled.astype(w_head_ref.dtype), w_head_ref[...],
                     preferred_element_type=jnp.float32)           # (TB, NC_pad)
    logits = logits + b_head_ref[...]
    out_ref[...] = logits.reshape(batch_tile, 1, -1).astype(out_ref.dtype)


def prepare_params(w_emb, b_emb, w_head, b_head, param_dtype=jnp.float32):
    """One-time parameter prep (hoisted out of every forward call):
    pad D / NC to 128 lanes and convert MXU-fed weights to `param_dtype`.
    Biases stay f32 (they are added to the f32 accumulator)."""
    _, D = w_emb.shape
    NC = w_head.shape[-1]
    D_pad = _round_up(D, 128)
    NC_pad = _round_up(NC, 128)
    w_emb_p = jnp.pad(w_emb, ((0, 0), (0, D_pad - D))).astype(param_dtype)
    b_emb_p = jnp.pad(b_emb.reshape(1, -1).astype(jnp.float32),
                      ((0, 0), (0, D_pad - D)))
    w_head_p = jnp.pad(w_head,
                       ((0, D_pad - D), (0, NC_pad - NC))).astype(param_dtype)
    b_head_p = jnp.pad(b_head.reshape(1, -1).astype(jnp.float32),
                       ((0, 0), (0, NC_pad - NC)))
    return (w_emb_p, b_emb_p, w_head_p, b_head_p)


def image_classifier_forward(x_nchw, params, *, patch, num_classes,
                             batch_tile=1, operand_dtype=jnp.float32):
    """x_nchw: [B, C, H, W] float32. Returns logits [B, num_classes] float32."""
    w_emb_p, b_emb_p, w_head_p, b_head_p = params
    B, C, H, W = x_nchw.shape
    P = patch
    Hp, Wp = H // P, W // P
    Np = Hp * Wp
    Pd = C * P * P
    D_pad = w_emb_p.shape[1]
    NC_pad = w_head_p.shape[1]

    tb = batch_tile
    B_pad = _round_up(B, tb)
    n_tiles = B_pad // tb
    # Sublane constraint: second-to-last block dim must be a multiple of 8.
    assert (tb * Np) % 8 == 0, "choose batch_tile so batch_tile*Np % 8 == 0"

    # Pad whole images (never partial patch rows) when B % batch_tile != 0;
    # padded images' logits are sliced off below and cannot bias other images'
    # per-image pooling reduction.
    if B_pad != B:
        x_nchw = jnp.pad(x_nchw, ((0, B_pad - B), (0, 0), (0, 0), (0, 0)))

    # Fused patchify (im2col of a stride-P Conv2d).  The operand-dtype cast
    # rides the same transpose (no extra pass), and the contraction dim Pd is
    # left UNPADDED: a block dim equal to the full array dim is legal, and a
    # K=Pd matmul is fine on the MXU -> no zero-padded second copy in HBM.
    patches = x_nchw.reshape(B_pad, C, Hp, P, Wp, P).transpose(0, 2, 4, 1, 3, 5)
    patches = patches.reshape(B_pad * Np, Pd).astype(operand_dtype)

    op_bytes = jnp.dtype(operand_dtype).itemsize
    cost = pl.CostEstimate(
        flops=2 * (B_pad * Np * Pd * D_pad + B_pad * D_pad * NC_pad)
              + B_pad * Np * D_pad,
        transcendentals=0,
        bytes_accessed=(patches.size * op_bytes
                        + w_emb_p.size * w_emb_p.dtype.itemsize
                        + w_head_p.size * w_head_p.dtype.itemsize
                        + (b_emb_p.size + b_head_p.size) * 4
                        + B_pad * NC_pad * 4))

    out = pl.pallas_call(
        partial(classifier_kernel, batch_tile=tb, num_patches=Np,
                inv_np=1.0 / Np),
        out_shape=jax.ShapeDtypeStruct((B_pad, 1, NC_pad), jnp.float32),
        grid_spec=pltpu.PrefetchScalarGridSpec(
            num_scalar_prefetch=0,
            grid=(n_tiles,),                    # batch-tiled, pipelined grid
            in_specs=[
                # streamed patch rows, double-buffered by the Pallas pipeline
                pl.BlockSpec((tb * Np, Pd), lambda i: (i, 0)),
                # weights/biases: constant block index -> VMEM-resident
                pl.BlockSpec((Pd, D_pad), lambda i: (0, 0)),
                pl.BlockSpec((1, D_pad), lambda i: (0, 0)),
                pl.BlockSpec((D_pad, NC_pad), lambda i: (0, 0)),
                pl.BlockSpec((1, NC_pad), lambda i: (0, 0)),
            ],
            out_specs=pl.BlockSpec((tb, 1, NC_pad), lambda i: (i, 0, 0)),
        ),
        compiler_params=pltpu.CompilerParams(
            # 'parallel' batch axis -> both v7x TensorCores get work; no-op on
            # single-TC v5e/v6e.  At real ViT shapes pick batch_tile so that
            # 2 x (tb*Np, Pd) operand tiles + resident weights + the
            # (tb*Np, D_pad) f32 feats fit v7x's 64 MiB VMEM (raise
            # vmem_limit_bytes here if you exceed the 32 MiB scoped default).
            dimension_semantics=("parallel",)),
        cost_estimate=cost,
    )(patches, w_emb_p, b_emb_p, w_head_p, b_head_p)

    # Lane-dense (B_pad, NC_pad) slab -> true logits.
    return out.reshape(B_pad, NC_pad)[:B, :num_classes]


def reference_forward(x_nchw, w_emb, b_emb, w_head, b_head, patch):
    """Pure-JAX reference for correctness checking."""
    B, C, H, W = x_nchw.shape
    P = patch
    Hp, Wp = H // P, W // P
    patches = x_nchw.reshape(B, C, Hp, P, Wp, P).transpose(0, 2, 4, 1, 3, 5)
    patches = patches.reshape(B, Hp * Wp, C * P * P)
    feats = jnp.maximum(patches @ w_emb + b_emb, 0.0)
    pooled = feats.mean(axis=1)
    return pooled @ w_head + b_head


if __name__ == "__main__":
    # Small, module-consistent shapes.
    B, C, H, W = 2, 4, 16, 16
    P = 4                       # patch size
    D = 32                      # feature (hidden) dim of the image encoder
    NC = 10                     # number of classes in the classification head
    Pd = C * P * P              # 64

    key = jax.random.PRNGKey(0)
    kx, kw1, kb1, kw2, kb2 = jax.random.split(key, 5)

    x = jax.random.normal(kx, (B, C, H, W), dtype=jnp.float32)
    # image_encoder params (patch-embed conv weight flattened to [C*P*P, D])
    w_emb = jax.random.normal(kw1, (Pd, D), dtype=jnp.float32) * 0.05
    b_emb = jax.random.normal(kb1, (1, D), dtype=jnp.float32) * 0.01
    # classification_head params (Linear: weight [D, NC], bias [NC])
    w_head = jax.random.normal(kw2, (D, NC), dtype=jnp.float32) * 0.05
    b_head = jax.random.normal(kb2, (1, NC), dtype=jnp.float32) * 0.01

    ref = reference_forward(x, w_emb, b_emb, w_head, b_head, P)

    # Parameters are padded/converted ONCE (hoisted out of the forward path).
    params_f32 = prepare_params(w_emb, b_emb, w_head, b_head, jnp.float32)
    params_bf16 = prepare_params(w_emb, b_emb, w_head, b_head, jnp.bfloat16)

    # f32 MXU path (exact-ish).  grid=(2,) parallel, batch_tile=1.
    fwd_f32 = jax.jit(partial(image_classifier_forward, patch=P,
                              num_classes=NC, batch_tile=1,
                              operand_dtype=jnp.float32))
    logits = jax.block_until_ready(fwd_f32(x, params_f32))
    assert logits.shape == (B, NC)
    assert jnp.allclose(logits, ref, atol=1e-3, rtol=1e-3)

    # bf16 MXU-operand path (operands converted in the wrapper/init, f32
    # accumulate + f32 elementwise) -> half the HBM->VMEM DMA bytes.
    fwd_bf16 = jax.jit(partial(image_classifier_forward, patch=P,
                               num_classes=NC, batch_tile=1,
                               operand_dtype=jnp.bfloat16))
    logits_bf16 = jax.block_until_ready(fwd_bf16(x, params_bf16))
    assert jnp.allclose(logits_bf16, ref, atol=5e-2, rtol=5e-2)

    print("KERNEL_OK")
</pallas_src>

<mosaic_0001>
module attributes {stable_mosaic.version = 11 : i64} {
  func.func @classifier_kernel(%arg0: i32, %arg1: memref<16x64xf32, #tpu.memory_space<vmem>>, %arg2: memref<64x128xf32, #tpu.memory_space<vmem>>, %arg3: memref<1x128xf32, #tpu.memory_space<vmem>>, %arg4: memref<128x128xf32, #tpu.memory_space<vmem>>, %arg5: memref<1x128xf32, #tpu.memory_space<vmem>>, %arg6: memref<1x1x128xf32, #tpu.memory_space<vmem>>) attributes {dimension_semantics = [#tpu.dimension_semantics<parallel>], iteration_bounds = array<i64: 2>, scalar_prefetch = 0 : i64, scratch_operands = 0 : i64, tpu.core_type = #tpu.core_type<tc>, window_params = [{transform_indices = @transform_0, window_bounds = array<i64: 16, 64>}, {pipeline_mode = #tpu.pipeline_mode<synchronous>, transform_indices = @transform_1, window_bounds = array<i64: 64, 128>}, {pipeline_mode = #tpu.pipeline_mode<synchronous>, transform_indices = @transform_2, window_bounds = array<i64: 1, 128>}, {pipeline_mode = #tpu.pipeline_mode<synchronous>, transform_indices = @transform_3, window_bounds = array<i64: 128, 128>}, {pipeline_mode = #tpu.pipeline_mode<synchronous>, transform_indices = @transform_4, window_bounds = array<i64: 1, 128>}, {transform_indices = @transform_5, window_bounds = array<i64: 1, 1, 128>}]} {
    %c0 = arith.constant 0 : index
    %c0_0 = arith.constant 0 : index
    %0 = vector.load %arg1[%c0, %c0_0] : memref<16x64xf32, #tpu.memory_space<vmem>>, vector<16x64xf32>
    %c0_1 = arith.constant 0 : index
    %c0_2 = arith.constant 0 : index
    %1 = vector.load %arg2[%c0_1, %c0_2] : memref<64x128xf32, #tpu.memory_space<vmem>>, vector<64x128xf32>
    %cst = arith.constant dense<0.000000e+00> : vector<16x128xf32>
    %2 = tpu.matmul %0, %1, %cst {dimension_numbers = #tpu.dot_dimension_numbers<[1], [0], [0], [1], [0, 0, 1, 1], [], []>} : vector<16x64xf32>, vector<64x128xf32>, vector<16x128xf32> -> vector<16x128xf32>
    %c0_3 = arith.constant 0 : index
    %c0_4 = arith.constant 0 : index
    %3 = vector.load %arg3[%c0_3, %c0_4] : memref<1x128xf32, #tpu.memory_space<vmem>>, vector<1x128xf32>
    %4 = vector.broadcast %3 : vector<1x128xf32> to vector<16x128xf32>
    %5 = arith.addf %2, %4 : vector<16x128xf32>
    %cst_5 = arith.constant 0.000000e+00 : f32
    %6 = vector.broadcast %cst_5 : f32 to vector<16x128xf32>
    %7 = arith.maximumf %5, %6 : vector<16x128xf32>
    %cst_6 = arith.constant dense<0.000000e+00> : vector<128xf32>
    %8 = vector.multi_reduction <add>, %7, %cst_6 [0] : vector<16x128xf32> to vector<128xf32>
    %9 = vector.shape_cast %8 : vector<128xf32> to vector<1x128xf32>
    %cst_7 = arith.constant 6.250000e-02 : f32
    %10 = vector.broadcast %cst_7 : f32 to vector<1x128xf32>
    %11 = arith.mulf %9, %10 : vector<1x128xf32>
    %c0_8 = arith.constant 0 : index
    %c0_9 = arith.constant 0 : index
    %12 = vector.load %arg4[%c0_8, %c0_9] : memref<128x128xf32, #tpu.memory_space<vmem>>, vector<128x128xf32>
    %cst_10 = arith.constant dense<0.000000e+00> : vector<1x128xf32>
    %13 = tpu.matmul %11, %12, %cst_10 {dimension_numbers = #tpu.dot_dimension_numbers<[1], [0], [0], [1], [0, 0, 1, 1], [], []>} : vector<1x128xf32>, vector<128x128xf32>, vector<1x128xf32> -> vector<1x128xf32>
    %c0_11 = arith.constant 0 : index
    %c0_12 = arith.constant 0 : index
    %14 = vector.load %arg5[%c0_11, %c0_12] : memref<1x128xf32, #tpu.memory_space<vmem>>, vector<1x128xf32>
    %15 = arith.addf %13, %14 : vector<1x128xf32>
    %16 = vector.shape_cast %15 : vector<1x128xf32> to vector<1x1x128xf32>
    %c0_13 = arith.constant 0 : index
    %c0_14 = arith.constant 0 : index
    %c0_15 = arith.constant 0 : index
    %17 = vector.load %arg6[%c0_13, %c0_14, %c0_15] : memref<1x1x128xf32, #tpu.memory_space<vmem>>, vector<1x1x128xf32>
    tpu.vector_store %arg6[%c0_13, %c0_14, %c0_15], %16 {strides = array<i32>} : memref<1x1x128xf32, #tpu.memory_space<vmem>>, vector<1x1x128xf32>,
    return
  }
  func.func @transform_0(%arg0: i32) -> (i32, i32) {
    %c0_i32 = arith.constant 0 : i32
    %c0_i32_0 = arith.constant 0 : i32
    return %arg0, %c0_i32 : i32, i32
  }
  func.func @transform_1(%arg0: i32) -> (i32, i32) {
    %c0_i32 = arith.constant 0 : i32
    %c0_i32_0 = arith.constant 0 : i32
    %c0_i32_1 = arith.constant 0 : i32
    return %c0_i32, %c0_i32_0 : i32, i32
  }
  func.func @transform_2(%arg0: i32) -> (i32, i32) {
    %c0_i32 = arith.constant 0 : i32
    %c0_i32_0 = arith.constant 0 : i32
    %c0_i32_1 = arith.constant 0 : i32
    return %c0_i32, %c0_i32_0 : i32, i32
  }
  func.func @transform_3(%arg0: i32) -> (i32, i32) {
    %c0_i32 = arith.constant 0 : i32
    %c0_i32_0 = arith.constant 0 : i32
    %c0_i32_1 = arith.constant 0 : i32
    return %c0_i32, %c0_i32_0 : i32, i32
  }
  func.func @transform_4(%arg0: i32) -> (i32, i32) {
    %c0_i32 = arith.constant 0 : i32
    %c0_i32_0 = arith.constant 0 : i32
    %c0_i32_1 = arith.constant 0 : i32
    return %c0_i32, %c0_i32_0 : i32, i32
  }
  func.func @transform_5(%arg0: i32) -> (i32, i32, i32) {
    %c0_i32 = arith.constant 0 : i32
    %c0_i32_0 = arith.constant 0 : i32
    %c0_i32_1 = arith.constant 0 : i32
    return %arg0, %c0_i32, %c0_i32_0 : i32, i32, i32
  }
}

</mosaic_0001>

<llo_original>
// kernel: image_classifier_forward.1
$region0: #{image_classifier_forward.1}
  #allocation0 [shape = 'u32[]', space=smem, size = 0x4, offset = 0x4, fixed_abs, tag = 'smem constant byte address 0x4 - core index']
  #allocation1 [shape = 'u32[144,128]{1,0:T(1,128)}', space=vmem, size = 0x12000, scoped, tag = 'internal scratch']
  %s0 = inlined_call_operand.vmem [shape: f32[32,64], index: 0, kind: input, shape index: {}]
  %s1 = inlined_call_operand.vmem [shape: f32[64,128], index: 1, kind: input, shape index: {}]
  %s2 = inlined_call_operand.vmem [shape: f32[1,128], index: 2, kind: input, shape index: {}]
  %s3 = inlined_call_operand.vmem [shape: f32[128,128], index: 3, kind: input, shape index: {}]
  %s4 = inlined_call_operand.vmem [shape: f32[1,128], index: 4, kind: input, shape index: {}]
  %s5 = inlined_call_operand.hbm [shape: f32[2,1,128], index: 5, kind: output, shape index: {}]
  %s6 = sld [smem:[#allocation0]]
  $region53: #{image_classifier_forward.1} parent=0
    _
  %s8 = ssub.s32 1, %s6
  %s9 = scalar_select 0, %s8, %s6
  $region1: #{image_classifier_forward.1} parent=0
    #allocation2 [shape = 'u8[1024]{0}', space=vmem, size = 0x400, scoped, tag = 'output window, operand 0']
    #allocation3 [shape = 's32[2]{0}', space=sflag, size = 0x8, scoped, tag = 'scoped memory for image_classifier_forward.1']
    %10 = vsyncpa [#allocation3], 0
    %s11 = scalar_lea.sflag [#allocation3], 1
    %12 = vsyncpa %s11, 0
    loop: start=0, step=1, limit=4
    $region2: #{image_classifier_forward.1} parent=1 // loop_pre_header
      _
    $region3: #{image_classifier_forward.1} parent=1 // loop_header
      %s14 = sphi 0, %s18
      %p15 = scmp.ge.s32.totalorder %s14, 4
      %s24 = sphi 0, %s26
      %s27 = sphi 0, %s24
      %s28 = sphi 0, %s27
      %s44 = sphi 0, %s28
      %s48 = sphi 0, %s48
      %s50 = sphi 0, %s48
      %s51 = sphi 0, %s50
      %s65 = sphi 0, %s51
      %s69 = sphi 0, %s69
      %s71 = sphi 0, %s69
      %s72 = sphi 0, %s71
      %s86 = sphi 0, %s72
      %s90 = sphi 0, %s90
      %s92 = sphi 0, %s90
      %s93 = sphi 0, %s92
      %s107 = sphi 0, %s93
      %s111 = sphi 0, %s111
      %s113 = sphi 0, %s111
      %s114 = sphi 0, %s113
      %s128 = sphi 0, %s114
      %s134 = sphi 0, %s136
      %s137 = sphi 0, %s134
      %s138 = sphi 0, %s137
      %s154 = sphi 0, %s138
    $region4: #{image_classifier_forward.1} parent=1 // loop_header_branch
      %17 = sbr.rel (%p15) target = $region8
    $region5: #{image_classifier_forward.1} parent=1 // loop_body
      %s19 = ssub.s32 %s14, 1
      %s20 = ssub.s32 %s14, 2
      %s21 = sadd.s32 %s14, 1
      %s22 = ssub.s32 %s14, %s21
      %p23 = scmp.eq.s32.totalorder %s22, 0
      %s25 = sadd.s32 %s24, 1
      %s26 = scalar_select %p23, %s24, %s25
      %p29 = pneg %p23
      %p30 = scmp.eq.s32.totalorder %s14, 1
      %p31 = por %p29, %p30
      %p32 = scmp.ne.s32.totalorder %s24, %s27
      %p33 = scmp.eq.s32.totalorder %s14, 0
      %p34 = por %p32, %p33
      %p35 = scmp.ne.s32.totalorder %s24, %s27
      %p36 = scmp.eq.s32.totalorder %s19, 1
      %p37 = por %p35, %p36
      %p38 = scmp.ne.s32.totalorder %s27, %s28
      %p39 = scmp.eq.s32.totalorder %s19, 0
      %p40 = por %p38, %p39
      %p41 = scmp.ne.s32.totalorder %s27, %s28
      %p42 = scmp.eq.s32.totalorder %s20, 1
      %p43 = por %p41, %p42
      %p45 = scmp.ne.s32.totalorder %s28, %s44
      %p46 = scmp.eq.s32.totalorder %s20, 0
      %p47 = por %p45, %p46
      %s49 = sadd.s32 %s48, 1
      %p52 = scmp.eq.s32.totalorder %s14, 1
      %p53 = scmp.ne.s32.totalorder %s48, %s50
      %p54 = scmp.eq.s32.totalorder %s14, 0
      %p55 = por %p53, %p54
      %p56 = scmp.ne.s32.totalorder %s48, %s50
      %p57 = scmp.eq.s32.totalorder %s19, 1
      %p58 = por %p56, %p57
      %p59 = scmp.ne.s32.totalorder %s50, %s51
      %p60 = scmp.eq.s32.totalorder %s19, 0
      %p61 = por %p59, %p60
      %p62 = scmp.ne.s32.totalorder %s50, %s51
      %p63 = scmp.eq.s32.totalorder %s20, 1
      %p64 = por %p62, %p63
      %p66 = scmp.ne.s32.totalorder %s51, %s65
      %p67 = scmp.eq.s32.totalorder %s20, 0
      %p68 = por %p66, %p67
      %s70 = sadd.s32 %s69, 1
      %p73 = scmp.eq.s32.totalorder %s14, 1
      %p74 = scmp.ne.s32.totalorder %s69, %s71
      %p75 = scmp.eq.s32.totalorder %s14, 0
      %p76 = por %p74, %p75
      %p77 = scmp.ne.s32.totalorder %s69, %s71
      %p78 = scmp.eq.s32.totalorder %s19, 1
      %p79 = por %p77, %p78
      %p80 = scmp.ne.s32.totalorder %s71, %s72
      %p81 = scmp.eq.s32.totalorder %s19, 0
      %p82 = por %p80, %p81
      %p83 = scmp.ne.s32.totalorder %s71, %s72
      %p84 = scmp.eq.s32.totalorder %s20, 1
      %p85 = por %p83, %p84
      %p87 = scmp.ne.s32.totalorder %s72, %s86
      %p88 = scmp.eq.s32.totalorder %s20, 0
      %p89 = por %p87, %p88
      %s91 = sadd.s32 %s90, 1
      %p94 = scmp.eq.s32.totalorder %s14, 1
      %p95 = scmp.ne.s32.totalorder %s90, %s92
      %p96 = scmp.eq.s32.totalorder %s14, 0
      %p97 = por %p95, %p96
      %p98 = scmp.ne.s32.totalorder %s90, %s92
      %p99 = scmp.eq.s32.totalorder %s19, 1
      %p100 = por %p98, %p99
      %p101 = scmp.ne.s32.totalorder %s92, %s93
      %p102 = scmp.eq.s32.totalorder %s19, 0
      %p103 = por %p101, %p102
      %p104 = scmp.ne.s32.totalorder %s92, %s93
      %p105 = scmp.eq.s32.totalorder %s20, 1
      %p106 = por %p104, %p105
      %p108 = scmp.ne.s32.totalorder %s93, %s107
      %p109 = scmp.eq.s32.totalorder %s20, 0
      %p110 = por %p108, %p109
      %s112 = sadd.s32 %s111, 1
      %p115 = scmp.eq.s32.totalorder %s14, 1
      %p116 = scmp.ne.s32.totalorder %s111, %s113
      %p117 = scmp.eq.s32.totalorder %s14, 0
      %p118 = por %p116, %p117
      %p119 = scmp.ne.s32.totalorder %s111, %s113
      %p120 = scmp.eq.s32.totalorder %s19, 1
      %p121 = por %p119, %p120
      %p122 = scmp.ne.s32.totalorder %s113, %s114
      %p123 = scmp.eq.s32.totalorder %s19, 0
      %p124 = por %p122, %p123
      %p125 = scmp.ne.s32.totalorder %s113, %s114
      %p126 = scmp.eq.s32.totalorder %s20, 1
      %p127 = por %p125, %p126
      %p129 = scmp.ne.s32.totalorder %s114, %s128
      %p130 = scmp.eq.s32.totalorder %s20, 0
      %p131 = por %p129, %p130
      %s132 = ssub.s32 %s14, %s21
      %p133 = scmp.eq.s32.totalorder %s132, 0
      %s135 = sadd.s32 %s134, 1
      %s136 = scalar_select %p133, %s134, %s135
      %p139 = pneg %p133
      %p140 = scmp.eq.s32.totalorder %s14, 1
      %p141 = por %p139, %p140
      %p142 = scmp.ne.s32.totalorder %s134, %s137
      %p143 = scmp.eq.s32.totalorder %s14, 0
      %p144 = por %p142, %p143
      %p145 = scmp.ne.s32.totalorder %s134, %s137
      %p146 = scmp.eq.s32.totalorder %s19, 1
      %p147 = por %p145, %p146
      %p148 = scmp.ne.s32.totalorder %s137, %s138
      %p149 = scmp.eq.s32.totalorder %s19, 0
      %p150 = por %p148, %p149
      %p151 = scmp.ne.s32.totalorder %s137, %s138
      %p152 = scmp.eq.s32.totalorder %s20, 1
      %p153 = por %p151, %p152
      %p155 = scmp.ne.s32.totalorder %s138, %s154
      %p156 = scmp.eq.s32.totalorder %s20, 0
      %p157 = por %p155, %p156
      %p158 = scmp.le.s32.totalorder 1, %s14
      %p159 = scmp.lt.s32.totalorder %s14, 3
      %p160 = pnand %p158, %p159
      %p161 = pneg %p160
      // Predicated region
      $region9: #{image_classifier_forward.1} parent=5 // pred_check
        _
      $region10: #{image_classifier_forward.1} parent=5 // pred_check_branch
        %163 = sbr.rel (%p160) target = $region12
      $region11: #{image_classifier_forward.1} parent=5 // pred_region
        %s164 = ssub.s32 %s14, 1
        // Predicated region
        $region13: #{image_classifier_forward.1} parent=11 // pred_check
          %p165 = pneg %p61
        $region14: #{image_classifier_forward.1} parent=11 // pred_check_branch
          %167 = sbr.rel (%p165) target = $region16
        $region15: #{image_classifier_forward.1} parent=11 // pred_region
          _
        $region16: #{image_classifier_forward.1} parent=11 // pred_fallthru
          _
        // Predicated region
        $region17: #{image_classifier_forward.1} parent=11 // pred_check
          %p168 = pneg %p82
        $region18: #{image_classifier_forward.1} parent=11 // pred_check_branch
          %170 = sbr.rel (%p168) target = $region20
        $region19: #{image_classifier_forward.1} parent=11 // pred_region
          _
        $region20: #{image_classifier_forward.1} parent=11 // pred_fallthru
          _
        // Predicated region
        $region21: #{image_classifier_forward.1} parent=11 // pred_check
          %p171 = pneg %p103
        $region22: #{image_classifier_forward.1} parent=11 // pred_check_branch
          %173 = sbr.rel (%p171) target = $region24
        $region23: #{image_classifier_forward.1} parent=11 // pred_region
          _
        $region24: #{image_classifier_forward.1} parent=11 // pred_fallthru
          _
        // Predicated region
        $region25: #{image_classifier_forward.1} parent=11 // pred_check
          %p174 = pneg %p124
        $region26: #{image_classifier_forward.1} parent=11 // pred_check_branch
          %176 = sbr.rel (%p174) target = $region28
        $region27: #{image_classifier_forward.1} parent=11 // pred_region
          _
        $region28: #{image_classifier_forward.1} parent=11 // pred_fallthru
          _
      $region12: #{image_classifier_forward.1} parent=5 // pred_fallthru
        _
      %p177 = scmp.lt.s32.totalorder %s14, 2
      // Predicated region
      $region29: #{image_classifier_forward.1} parent=5 // pred_check
        %p178 = pneg %p177
      $region30: #{image_classifier_forward.1} parent=5 // pred_check_branch
        %180 = sbr.rel (%p178) target = $region32
      $region31: #{image_classifier_forward.1} parent=5 // pred_region
        // Predicated region
        $region33: #{image_classifier_forward.1} parent=31 // pred_check
          %p181 = pneg %p34
        $region34: #{image_classifier_forward.1} parent=31 // pred_check_branch
          %183 = sbr.rel (%p181) target = $region36
        $region35: #{image_classifier_forward.1} parent=31 // pred_region
          %s184 = smul.u32 2, %s14
          %p185 = scmp.lt.s32.totalorder %s184, 3
          %s186 = scalar_select %p185, %s184, 3
          %s187 = smul.addr %s186, 8
          %s188 = scalar_lea.vmem %s0, %s187
          %s189 = smul.u32 2, %s14
        $region36: #{image_classifier_forward.1} parent=31 // pred_fallthru
          _
      $region32: #{image_classifier_forward.1} parent=5 // pred_fallthru
        _
      %p190 = scmp.le.s32.totalorder 1, %s14
      %p191 = scmp.lt.s32.totalorder %s14, 3
      %p192 = pnand %p190, %p191
      %p193 = pneg %p192
      // Predicated region
      $region37: #{image_classifier_forward.1} parent=5 // pred_check
        _
      $region38: #{image_classifier_forward.1} parent=5 // pred_check_branch
        %195 = sbr.rel (%p192) target = $region40
      $region39: #{image_classifier_forward.1} parent=5 // pred_region
        %s196 = ssub.s32 %s14, 1
        %s197 = smul.u32 2, %s19
        %p198 = scmp.lt.s32.totalorder %s197, 3
        %s199 = scalar_select %p198, %s197, 3
        %s200 = smul.addr %s199, 8
        %s201 = scalar_lea.vmem %s0, %s200
        %p202 = pneg %p40
        %p203 = pneg %p37
        %p204 = pneg %p61
        %p205 = pneg %p58
        %p206 = pneg %p82
        %p207 = pneg %p79
        %p208 = pneg %p103
        %p209 = pneg %p100
        %p210 = pneg %p124
        %p211 = pneg %p121
        %p212 = pneg %p150
        %p213 = pneg %p147
        %s214 = sand.u32 %s137, 1
        %s215 = scalar_lea.sflag [#allocation3], %s214
        %s216 = sand.u32 %s137, 1
        %s217 = scalar_lea.vmem [#allocation2], %s216
        %s218 = smul.u32 2, %s19
        %p219 = scmp.lt.s32.totalorder %s218, 3
        %s220 = scalar_select %p219, %s218, 3
        %s221 = smul.addr %s220, 8
        %s222 = scalar_lea.vmem %s0, %s221
        %s223 = smul.u32 2, %s19
        %v224 = vld [vmem:[%s222] sm:$0xff]
        %v225 = vld [vmem:[%s222 + $0x8] sm:$0xff]
        %v226 = vld [vmem:[%s1] sm:$0xff]
        %v227 = vld [vmem:[%s1 + $0x8] sm:$0xff]
        %v228 = vld [vmem:[%s1 + $0x10] sm:$0xff]
        %v229 = vld [vmem:[%s1 + $0x18] sm:$0xff]
        %v230 = vld [vmem:[%s1 + $0x20] sm:$0xff]
        %v231 = vld [vmem:[%s1 + $0x28] sm:$0xff]
        %v232 = vld [vmem:[%s1 + $0x30] sm:$0xff]
        %v233 = vld [vmem:[%s1 + $0x38] sm:$0xff]
        %v234 = vld [vmem:[%s2] sm:$0x1]
        %v236 = vlaneseq
        %v237 = vshrl.u32 %v236, 7
        %v238 = vsub.s32 0, %v237
        %v239 = vrot.slane %v234, %v238
        %vm241 = vcmask 523264
        %v243 = vsel %vm241, %v224, 0
        %v246 = vsel %vm241, %v225, 0
        %248 = vmatprep.subr.mxu0 0.0
        %249 = vmatpush1.msra.mxu0 %v226
        %250 = vmatprep.subr.mxu0 0.0
        %251 = vmatpush1.msra.mxu0 %v227
        %252 = vmatprep.subr.mxu0 0.0
        %253 = vmatpush1.msra.mxu0 %v228
        %254 = vmatprep.subr.mxu0 0.0
        %255 = vmatpush1.msra.mxu0 %v229
        %256 = vmatprep.subr.mxu0 0.0
        %257 = vmatpush1.msra.mxu0 %v230
        %258 = vmatprep.subr.mxu0 0.0
        %259 = vmatpush1.msra.mxu0 %v231
        %260 = vmatprep.subr.mxu0 0.0
        %261 = vmatpush1.msra.mxu0 %v232
        %262 = vmatprep.subr.mxu0 0.0
        %263 = vmatpush1.msra.mxu0 %v233
        %264 = vmatprep.subr.mxu0 0.0
        %265 = vmatpush1.msra.mxu0 0.0
        %266 = vmatprep.subr.mxu0 0.0
        %267 = vmatpush1.msra.mxu0 0.0
        %268 = vmatprep.subr.mxu0 0.0
        %269 = vmatpush1.msra.mxu0 0.0
        %270 = vmatprep.subr.mxu0 0.0
        %271 = vmatpush1.msra.mxu0 0.0
        %272 = vmatprep.subr.mxu0 0.0
        %273 = vmatpush1.msra.mxu0 0.0
        %274 = vmatprep.subr.mxu0 0.0
        %275 = vmatpush1.msra.mxu0 0.0
        %276 = vmatprep.subr.mxu0 0.0
        %277 = vmatpush1.msra.mxu0 0.0
        %278 = vmatprep.subr.mxu0 0.0
        %279 = vmatpush1.msra.mxu0 0.0
        %280 = vmatprep.subr.mxu0 0.0
        %281 = vmatpush1.msra.mxu0 0.0
        %282 = vmatprep.subr.mxu0 0.0
        %283 = vmatpush1.msra.mxu0 0.0
        %284 = vmatprep.subr.mxu0 0.0
        %285 = vmatpush1.msra.mxu0 0.0
        %286 = vmatprep.subr.mxu0 0.0
        %287 = vmatpush1.msra.mxu0 0.0
        %288 = vmatprep.subr.mxu0 0.0
        %289 = vmatpush1.msra.mxu0 0.0
        %290 = vmatprep.subr.mxu0 0.0
        %291 = vmatpush1.msra.mxu0 0.0
        %292 = vmatprep.subr.mxu0 0.0
        %293 = vmatpush1.msra.mxu0 0.0
        %294 = vmatprep.subr.mxu0 0.0
        %295 = vmatpush1.msra.mxu0 0.0
        %296 = vmatprep.subr.mxu0 0.0
        %297 = vmatpush1.msra.mxu0 0.0
        %298 = vmatprep.subr.mxu0 0.0
        %299 = vmatpush1.msra.mxu0 0.0
        %300 = vmatprep.subr.mxu0 0.0
        %301 = vmatpush1.msra.mxu0 0.0
        %302 = vmatprep.subr.mxu0 0.0
        %303 = vmatpush1.msra.mxu0 0.0
        %304 = vmatprep.subr.mxu0 0.0
        %305 = vmatpush1.msra.mxu0 0.0
        %306 = vmatprep.subr.mxu0 0.0
        %307 = vmatpush1.msra.mxu0 0.0
        %308 = vmatprep.subr.mxu0 0.0
        %309 = vmatpush1.msra.mxu0 0.0
        %310 = vmatprep.subr.mxu0 0.0
        %311 = vmatpush1.msra.mxu0 0.0
        %312 = vmatprep.mubr.f32.mxu0 0.0
        %313 = vmatmul.mubr.f32.gmra.mrb[0].mxu0 %v243
        %v314 = vpop.f32.mrb[0].mxu0
        %v315 = vadd.f32 %v239, %v314
        %v316 = vpop.f32.mrb[0].mxu0
        %317 = vmatprep.mubr.f32.mxu0 0.0
        %318 = vmatmul.mubr.f32.gmra.mrb[0].mxu0 %v246
        %v319 = vpop.f32.mrb[0].mxu0
        %v320 = vadd.f32 %v239, %v319
        %v321 = vpop.f32.mrb[0].mxu0
        %322 = vdwg.mxu0
        %v323 = vmax.f32 %v315, 0.0
        %v324 = vmax.f32 %v320, 0.0
        %v325 = vadd.f32 %v323, %v324
        %v326 = vrot.slane %v325, 4
        %v327 = vadd.f32 %v325, %v326
        %v328 = vrot.slane %v327, 2
        %v329 = vadd.f32 %v327, %v328
        %v330 = vrot.slane %v329, 1
        %v331 = vadd.f32 %v329, %v330
        %v332 = vmul.f32 %v331, 0.0625
        %v333 = vld [vmem:[%s3] sm:$0xff]
        %v334 = vld [vmem:[%s3 + $0x8] sm:$0xff]
        %v335 = vld [vmem:[%s3 + $0x10] sm:$0xff]
        %v336 = vld [vmem:[%s3 + $0x18] sm:$0xff]
        %v337 = vld [vmem:[%s3 + $0x20] sm:$0xff]
        %v338 = vld [vmem:[%s3 + $0x28] sm:$0xff]
        %v339 = vld [vmem:[%s3 + $0x30] sm:$0xff]
        %v340 = vld [vmem:[%s3 + $0x38] sm:$0xff]
        %v341 = vld [vmem:[%s3 + $0x40] sm:$0xff]
        %v342 = vld [vmem:[%s3 + $0x48] sm:$0xff]
        %v343 = vld [vmem:[%s3 + $0x50] sm:$0xff]
        %v344 = vld [vmem:[%s3 + $0x58] sm:$0xff]
        %v345 = vld [vmem:[%s3 + $0x60] sm:$0xff]
        %v346 = vld [vmem:[%s3 + $0x68] sm:$0xff]
        %v347 = vld [vmem:[%s3 + $0x70] sm:$0xff]
        %v348 = vld [vmem:[%s3 + $0x78] sm:$0xff]
        %v349 = vld [vmem:[%s4] sm:$0x1]
        %350 = vmatprep.subr.mxu0 0.0
        %351 = vmatpush1.msra.mxu0 %v333
        %352 = vmatprep.subr.mxu0 0.0
        %353 = vmatpush1.msra.mxu0 %v334
        %354 = vmatprep.subr.mxu0 0.0
        %355 = vmatpush1.msra.mxu0 %v335
        %356 = vmatprep.subr.mxu0 0.0
        %357 = vmatpush1.msra.mxu0 %v336
        %358 = vmatprep.subr.mxu0 0.0
        %359 = vmatpush1.msra.mxu0 %v337
        %360 = vmatprep.subr.mxu0 0.0
        %361 = vmatpush1.msra.mxu0 %v338
        %362 = vmatprep.subr.mxu0 0.0
        %363 = vmatpush1.msra.mxu0 %v339
        %364 = vmatprep.subr.mxu0 0.0
        %365 = vmatpush1.msra.mxu0 %v340
        %366 = vmatprep.subr.mxu0 0.0
        %367 = vmatpush1.msra.mxu0 %v341
        %368 = vmatprep.subr.mxu0 0.0
        %369 = vmatpush1.msra.mxu0 %v342
        %370 = vmatprep.subr.mxu0 0.0
        %371 = vmatpush1.msra.mxu0 %v343
        %372 = vmatprep.subr.mxu0 0.0
        %373 = vmatpush1.msra.mxu0 %v344
        %374 = vmatprep.subr.mxu0 0.0
        %375 = vmatpush1.msra.mxu0 %v345
        %376 = vmatprep.subr.mxu0 0.0
        %377 = vmatpush1.msra.mxu0 %v346
        %378 = vmatprep.subr.mxu0 0.0
        %379 = vmatpush1.msra.mxu0 %v347
        %380 = vmatprep.subr.mxu0 0.0
        %381 = vmatpush1.msra.mxu0 %v348
        %382 = vmatprep.subr.mxu0 0.0
        %383 = vmatpush1.msra.mxu0 0.0
        %384 = vmatprep.subr.mxu0 0.0
        %385 = vmatpush1.msra.mxu0 0.0
        %386 = vmatprep.subr.mxu0 0.0
        %387 = vmatpush1.msra.mxu0 0.0
        %388 = vmatprep.subr.mxu0 0.0
        %389 = vmatpush1.msra.mxu0 0.0
        %390 = vmatprep.subr.mxu0 0.0
        %391 = vmatpush1.msra.mxu0 0.0
        %392 = vmatprep.subr.mxu0 0.0
        %393 = vmatpush1.msra.mxu0 0.0
        %394 = vmatprep.subr.mxu0 0.0
        %395 = vmatpush1.msra.mxu0 0.0
        %396 = vmatprep.subr.mxu0 0.0
        %397 = vmatpush1.msra.mxu0 0.0
        %398 = vmatprep.subr.mxu0 0.0
        %399 = vmatpush1.msra.mxu0 0.0
        %400 = vmatprep.subr.mxu0 0.0
        %401 = vmatpush1.msra.mxu0 0.0
        %402 = vmatprep.subr.mxu0 0.0
        %403 = vmatpush1.msra.mxu0 0.0
        %404 = vmatprep.subr.mxu0 0.0
        %405 = vmatpush1.msra.mxu0 0.0
        %406 = vmatprep.subr.mxu0 0.0
        %407 = vmatpush1.msra.mxu0 0.0
        %408 = vmatprep.subr.mxu0 0.0
        %409 = vmatpush1.msra.mxu0 0.0
        %410 = vmatprep.subr.mxu0 0.0
        %411 = vmatpush1.msra.mxu0 0.0
        %412 = vmatprep.subr.mxu0 0.0
        %413 = vmatpush1.msra.mxu0 0.0
        %414 = vmatprep.mubr.f32.mxu0 0.0
        %415 = vmatmul.mubr.f32.gmra.mrb[0].mxu0 %v332
        %v416 = vpop.f32.mrb[0].mxu0
        %v417 = vadd.f32 %v349, %v416
        %v418 = vpop.f32.mrb[0].mxu0
        %419 = vdwg.mxu0
        %420 = vst [vmem:[%s217] sm:$0x1] %v417
        %s421 = sand.u32 %s137, 1
        %s422 = scalar_lea.sflag [#allocation3], %s421
        %s423 = sand.u32 %s137, 1
        %s424 = scalar_lea.vmem [#allocation2], %s423
        // Predicated region
        $region41: #{image_classifier_forward.1} parent=39 // pred_check
          %p425 = pneg %p147
        $region42: #{image_classifier_forward.1} parent=39 // pred_check_branch
          %427 = sbr.rel (%p425) target = $region44
        $region43: #{image_classifier_forward.1} parent=39 // pred_region
          %s429 = ssub.s32 16, 16
          %430 = vsyncadd %s422, %s429
          %s431 = smul.addr %s19, 16
          %s432 = scalar_lea.hbm %s5, %s431
          %s434 = sshll.u32 %s424, 4
          %s435 = int_to_ptr.vmem [resolvable:$true] %s434
          %437 = dma.vmem_to_hbm [thread:$0]  %s435, 16, %s432, %s422
        $region44: #{image_classifier_forward.1} parent=39 // pred_fallthru
          _
      $region40: #{image_classifier_forward.1} parent=5 // pred_fallthru
        _
      %p438 = scmp.le.s32.totalorder 2, %s14
      // Predicated region
      $region45: #{image_classifier_forward.1} parent=5 // pred_check
        %p439 = pneg %p438
      $region46: #{image_classifier_forward.1} parent=5 // pred_check_branch
        %441 = sbr.rel (%p439) target = $region48
      $region47: #{image_classifier_forward.1} parent=5 // pred_region
        %s442 = ssub.s32 %s14, 2
        // Predicated region
        $region49: #{image_classifier_forward.1} parent=47 // pred_check
          %p443 = pneg %p153
        $region50: #{image_classifier_forward.1} parent=47 // pred_check_branch
          %445 = sbr.rel (%p443) target = $region52
        $region51: #{image_classifier_forward.1} parent=47 // pred_region
          %s446 = sand.u32 %s138, 1
          %s447 = scalar_lea.sflag [#allocation3], %s446
          %s448 = sand.u32 %s138, 1
          %s449 = scalar_lea.vmem [#allocation2], %s448
          %450 = dma.done %s447, 16
        $region52: #{image_classifier_forward.1} parent=47 // pred_fallthru
          _
      $region48: #{image_classifier_forward.1} parent=5 // pred_fallthru
        _
    $region6: #{image_classifier_forward.1} parent=1 // loop_footer
      %s18 = sadd.s32 1, %s14
    $region7: #{image_classifier_forward.1} parent=1 // loop_footer_branch
      %13 = sbr.rel target = $region3
    $region8: #{image_classifier_forward.1} parent=1 // loop_exit
      _
    %451 = vsyncpa [#allocation3], 1
    %s452 = scalar_lea.sflag [#allocation3], 1
    %453 = vsyncpa %s452, 1

</llo_original>
